<compile_context>
chip_gen: v6e
topology: v6e:2x2x1
jax: 0.10.0
libtpu: 0.0.40
codegen_flags: <defaults>
</compile_context>

<pallas_src>
import functools
import math

import jax
import jax.numpy as jnp
from jax.experimental import pallas as pl
from jax.experimental.pallas import tpu as pltpu


# Target rows per conv M-tile.  The per-tile working set here is well under
# 1 MiB, far inside v5e's 16 MiB default scoped VMEM and v7x's 64 MiB physical
# VMEM.  v6e can raise this to 512-2048 for large fields; v7x should use about
# half the v6e value.  256 is chosen so the 16x16 demo (M=512 layers) also
# exercises the tiled two-pass BatchNorm path.
_TILE_M = 256
_VMEM_LIMIT = 32 * 1024 * 1024   # explicit, >= v5e's 16 MiB default, <= v7x physical


def _round_up(x, m):
    return ((x + m - 1) // m) * m


def _pick_tile(m, target):
    """Largest multiple-of-8 divisor of m that is <= target (else m itself)."""
    if m <= target:
        return m
    for cand in range((target // 8) * 8, 7, -8):
        if m % cand == 0:
            return cand
    return m


def _cparams():
    return pltpu.CompilerParams(dimension_semantics=("parallel",),
                                vmem_limit_bytes=_VMEM_LIMIT)


# -----------------------------------------------------------------------------
# Pallas kernels: conv-as-matmul (+ fused bias / BatchNorm / ReLU variants)
# -----------------------------------------------------------------------------
def _conv_bias_kernel(p_ref, w_ref, b_ref, o_ref):
    acc = jnp.dot(p_ref[...], w_ref[...], preferred_element_type=jnp.float32)
    o_ref[...] = (acc + b_ref[...]).astype(o_ref.dtype)


def _conv_bias_bn_relu_kernel(p_ref, w_ref, b_ref, o_ref, *, eps):
    # Single-tile fused path: matmul + bias + training-mode BatchNorm (batch
    # statistics over all M rows, weight=1, bias=0) + ReLU.  Stats are computed
    # in a single pass (sum and sum-of-squares).
    acc = jnp.dot(p_ref[...], w_ref[...], preferred_element_type=jnp.float32)
    acc = acc + b_ref[...]
    m = float(acc.shape[0])
    mean = jnp.sum(acc, axis=0, keepdims=True) / m
    ex2 = jnp.sum(acc * acc, axis=0, keepdims=True) / m
    var = jnp.maximum(ex2 - mean * mean, 0.0)
    acc = (acc - mean) * jax.lax.rsqrt(var + eps)
    o_ref[...] = jnp.maximum(acc, 0.0).astype(o_ref.dtype)


def _conv_bias_stats_kernel(p_ref, w_ref, b_ref, y_ref, s1_ref, s2_ref):
    # Tiled path, pass A: matmul + bias, plus per-tile channel sum / sum-of-sq
    # so BatchNorm statistics can be reduced outside the M-"parallel" grid.
    acc = jnp.dot(p_ref[...], w_ref[...], preferred_element_type=jnp.float32)
    acc = acc + b_ref[...]
    y_ref[...] = acc.astype(y_ref.dtype)
    s1_ref[...] = jnp.sum(acc, axis=0, keepdims=True)[None]
    s2_ref[...] = jnp.sum(acc * acc, axis=0, keepdims=True)[None]


def _bn_relu_kernel(y_ref, mean_ref, rstd_ref, o_ref):
    # Tiled path, pass B: apply normalization + ReLU.
    y = y_ref[...].astype(jnp.float32)
    o_ref[...] = jnp.maximum((y - mean_ref[...]) * rstd_ref[...], 0.0).astype(o_ref.dtype)


def conv2d_pallas(x_nhwc, w, b, padding=0, bn_relu=False, eps=1e-5,
                  tile_m=_TILE_M, out_dtype=jnp.float32):
    """Symmetric spatial `padding` then VALID conv, as M-tiled big-K MXU matmuls.

    x: (N,H,W,Cin), w: (KH,KW,Cin,Cout), b: (Cout,).  The conv is an
    (M, Kp) @ (Kp, Cp) bf16 matmul (f32 accumulation): M = N*Ho*Wo (batch folded
    into rows, tiled over a "parallel" grid), Kp = KH*KW*Cin zero-padded to a
    multiple of 128 (lane-dense loads), Cp = Cout zero-padded to 128 (lane-dense
    stores).  bn_relu=True fuses training-mode BatchNorm + ReLU: fully in-kernel
    when one tile covers M, otherwise via a partial-stats pass + apply pass.
    bn_relu outputs are bf16; plain conv outputs use `out_dtype`.
    """
    N, H, W, Cin = x_nhwc.shape
    KH, KW, _, Cout = w.shape
    xp = x_nhwc
    if padding:
        xp = jnp.pad(xp, ((0, 0), (padding, padding), (padding, padding), (0, 0)))
    Hp, Wp = H + 2 * padding, W + 2 * padding
    Ho, Wo = Hp - KH + 1, Wp - KW + 1
    M = N * Ho * Wo
    K = KH * KW * Cin
    Kp = _round_up(K, 128)
    Cp = _round_up(Cout, 128)

    # im2col in bf16 (row order (n, oh, ow); K order (kh, kw, cin)), K padded.
    # TODO(synk): for large field_size, build the patch rows in-kernel from a
    # VMEM-resident padded input (avoids the KH*KW-times-larger patch array in
    # HBM); at 16x16 the materialized im2col is only launch/glue overhead.
    xp = xp.astype(jnp.bfloat16)
    slabs = [xp[:, kh:kh + Ho, kw:kw + Wo, :].reshape(M, Cin)
             for kh in range(KH) for kw in range(KW)]
    patches = slabs[0] if len(slabs) == 1 else jnp.concatenate(slabs, axis=-1)
    patches = jnp.pad(patches, ((0, 0), (0, Kp - K)))

    wf = jnp.pad(w.reshape(K, Cout),
                 ((0, Kp - K), (0, Cp - Cout))).astype(jnp.bfloat16)
    bf = jnp.pad(b, (0, Cp - Cout)).reshape(1, Cp).astype(jnp.float32)

    tm = _pick_tile(M, tile_m)
    G = M // tm
    p_spec = pl.BlockSpec((tm, Kp), lambda i: (i, 0))
    w_spec = pl.BlockSpec((Kp, Cp), lambda i: (0, 0))
    b_spec = pl.BlockSpec((1, Cp), lambda i: (0, 0))
    o_spec = pl.BlockSpec((tm, Cp), lambda i: (i, 0))

    if not bn_relu:
        out = pl.pallas_call(
            _conv_bias_kernel,
            out_shape=jax.ShapeDtypeStruct((M, Cp), out_dtype),
            grid=(G,), in_specs=[p_spec, w_spec, b_spec], out_specs=o_spec,
            compiler_params=_cparams(),
        )(patches, wf, bf)
    elif G == 1:
        out = pl.pallas_call(
            functools.partial(_conv_bias_bn_relu_kernel, eps=eps),
            out_shape=jax.ShapeDtypeStruct((M, Cp), jnp.bfloat16),
            grid=(1,), in_specs=[p_spec, w_spec, b_spec], out_specs=o_spec,
            compiler_params=_cparams(),
        )(patches, wf, bf)
    else:
        stat_spec = pl.BlockSpec((1, 1, Cp), lambda i: (i, 0, 0))
        y, ssum, ssq = pl.pallas_call(
            _conv_bias_stats_kernel,
            out_shape=(jax.ShapeDtypeStruct((M, Cp), jnp.bfloat16),
                       jax.ShapeDtypeStruct((G, 1, Cp), jnp.float32),
                       jax.ShapeDtypeStruct((G, 1, Cp), jnp.float32)),
            grid=(G,), in_specs=[p_spec, w_spec, b_spec],
            out_specs=(o_spec, stat_spec, stat_spec),
            compiler_params=_cparams(),
        )(patches, wf, bf)
        mean = jnp.sum(ssum, axis=0) / M                       # (1, Cp)
        var = jnp.maximum(jnp.sum(ssq, axis=0) / M - mean * mean, 0.0)
        rstd = jax.lax.rsqrt(var + eps)
        c_spec = pl.BlockSpec((1, Cp), lambda i: (0, 0))
        out = pl.pallas_call(
            _bn_relu_kernel,
            out_shape=jax.ShapeDtypeStruct((M, Cp), jnp.bfloat16),
            grid=(G,), in_specs=[o_spec, c_spec, c_spec], out_specs=o_spec,
            compiler_params=_cparams(),
        )(y, mean, rstd)

    return out[:, :Cout].reshape(N, Ho, Wo, Cout)


def conv_transpose2d_4x4_s2_pallas(x_nhwc, w, b):
    """ConvTranspose2d(k=4, stride=2, pad=0) followed by the [1:-1,1:-1] crop.

    Sub-pixel phase decomposition as a single 3x3 'same' conv whose channel
    groups are the 4 output phases, so no MXU FLOPs on dilation zeros.
    Correct parity (verified against a scatter-add reference in __main__):
    post-crop phase pr = (kh+1)%2 uses tap kh at 3x3 row r3 = 2-(kh+1)//2.
    """
    N, H, W, C = x_nhwc.shape
    KH, KW, _, Cout = w.shape          # (4, 4, C, Cout)
    w3 = jnp.zeros((3, 3, C, 4 * Cout), w.dtype)
    for kh in range(KH):
        for kw in range(KW):
            pr, pc = (kh + 1) % 2, (kw + 1) % 2
            r3, c3 = 2 - (kh + 1) // 2, 2 - (kw + 1) // 2
            ph = 2 * pr + pc
            w3 = w3.at[r3, c3, :, ph * Cout:(ph + 1) * Cout].set(w[kh, kw])
    b4 = jnp.tile(b, 4)
    y = conv2d_pallas(x_nhwc, w3, b4, padding=1, out_dtype=jnp.bfloat16)
    y = y.reshape(N, H, W, 2, 2, Cout)                   # (..., pr, pc, co)
    y = y.transpose(0, 1, 3, 2, 4, 5).reshape(N, 2 * H, 2 * W, Cout)
    return y


def _ref_conv_transpose_crop(x_nhwc, w, b):
    """Direct scatter-add reference for ConvTranspose2d(4,4,s=2) + [1:-1,1:-1]."""
    N, H, W, _ = x_nhwc.shape
    KH, KW, _, Co = w.shape
    out = jnp.zeros((N, 2 * H + 2, 2 * W + 2, Co), jnp.float32)
    for kh in range(KH):
        for kw in range(KW):
            contrib = jnp.einsum("nhwc,co->nhwo", x_nhwc, w[kh, kw])
            out = out.at[:, kh:kh + 2 * H:2, kw:kw + 2 * W:2, :].add(contrib)
    return out[:, 1:-1, 1:-1, :] + b


# -----------------------------------------------------------------------------
# Pallas kernel: bilinear grid_sample (align_corners=True, zeros padding)
# -----------------------------------------------------------------------------
def _grid_sample_kernel(coord_ref, img_ref, o_ref, *, W):
    # coord_ref: (1, HW, 8) f32 packed per-pixel [c11, w11, w10, w01, w00, 0,0,0]
    # img_ref:   (1, HWe, C_pad) bf16 flattened source image (zero padded)
    # o_ref:     (1, HW, C_pad) f32
    HW = o_ref.shape[1]
    HWe = img_ref.shape[1]
    c = coord_ref[0]                                   # (HW, 8)
    c11 = c[:, 0:1].astype(jnp.int32)                  # column of corner (y1, x1)
    w11 = c[:, 1:2]
    w10 = c[:, 2:3]
    w01 = c[:, 3:4]
    w00 = c[:, 4:5]
    col = jax.lax.broadcasted_iota(jnp.int32, (HW, HWe), 1)
    # One gather matrix with the bilinear corner weights baked in.  Out-of-range
    # columns only occur with zero weight, so missed matches are exact zeros.
    gmat = (jnp.where(col == c11, w11, 0.0)
            + jnp.where(col == c11 - 1, w10, 0.0)
            + jnp.where(col == c11 - W, w01, 0.0)
            + jnp.where(col == c11 - (W + 1), w00, 0.0))
    out = jnp.dot(gmat.astype(jnp.bfloat16), img_ref[0],
                  preferred_element_type=jnp.float32)
    o_ref[0] = out.astype(o_ref.dtype)


def grid_sample_bilinear(src_nhwc, locs):
    """src: (N,H,W,C); locs: (N,H,W,2) normalized coords, last dim = (x, y)."""
    N, H, W, C = src_nhwc.shape
    HW = H * W
    C_pad = _round_up(C, 128)
    HWe = _round_up(HW, 128)

    # align_corners=True un-normalization; clamping to [-1, W] / [-1, H] keeps
    # zeros-padding semantics exact (clamped corners carry zero weight).
    ix = jnp.clip(((locs[..., 0] + 1.0) * 0.5 * (W - 1)).reshape(N, HW), -1.0, float(W))
    iy = jnp.clip(((locs[..., 1] + 1.0) * 0.5 * (H - 1)).reshape(N, HW), -1.0, float(H))
    x0 = jnp.floor(ix)
    y0 = jnp.floor(iy)
    tx = ix - x0
    ty = iy - y0
    vx0 = ((x0 >= 0) & (x0 <= W - 1)).astype(jnp.float32)
    vx1 = (x0 <= W - 2).astype(jnp.float32)            # x1 = x0+1 >= 0 after clamp
    vy0 = ((y0 >= 0) & (y0 <= H - 1)).astype(jnp.float32)
    vy1 = (y0 <= H - 2).astype(jnp.float32)
    w00 = (1.0 - ty) * (1.0 - tx) * vy0 * vx0
    w01 = (1.0 - ty) * tx * vy0 * vx1
    w10 = ty * (1.0 - tx) * vy1 * vx0
    w11 = ty * tx * vy1 * vx1
    c11 = (y0 + 1.0) * W + (x0 + 1.0)                  # column of corner (y1, x1)
    zero = jnp.zeros_like(c11)
    coords = jnp.stack([c11, w11, w10, w01, w00, zero, zero, zero],
                       axis=-1).astype(jnp.float32)    # (N, HW, 8) lane-merged

    img = jnp.pad(src_nhwc.reshape(N, HW, C).astype(jnp.bfloat16),
                  ((0, 0), (0, HWe - HW), (0, C_pad - C)))

    # TODO(synk): the dense (HW, HWe) gather matrix only suits small field sizes
    # (here 16x16); larger fields need a tiled / DMA-gather formulation.
    out = pl.pallas_call(
        functools.partial(_grid_sample_kernel, W=W),
        out_shape=jax.ShapeDtypeStruct((N, HW, C_pad), jnp.float32),
        grid=(N,),
        in_specs=[pl.BlockSpec((1, HW, 8), lambda n: (n, 0, 0)),
                  pl.BlockSpec((1, HWe, C_pad), lambda n: (n, 0, 0))],
        out_specs=pl.BlockSpec((1, HW, C_pad), lambda n: (n, 0, 0)),
        compiler_params=_cparams(),
    )(coords, img)
    return out[:, :, :C].reshape(N, H, W, C)


# -----------------------------------------------------------------------------
# Module glue (parameter init, pooling, LocalizationNet / STN / CASENetSTN)
# -----------------------------------------------------------------------------
def _maxpool2x2(x_nhwc):
    N, H, W, C = x_nhwc.shape
    return x_nhwc.reshape(N, H // 2, 2, W // 2, 2, C).max(axis=(2, 4))


def init_params(key, num_classes=20, in_chn=23, img_chn=3):
    keys = jax.random.split(key, 9)

    def conv_p(k, kh, kw, cin, cout):
        std = math.sqrt(2.0 / (kh * kw * cout))  # PyTorch normal_(0, sqrt(2/n)) init
        return (jax.random.normal(k, (kh, kw, cin, cout), jnp.float32) * std,
                jnp.zeros((cout,), jnp.float32))

    cn = 32
    return {
        "casenet_feats5": conv_p(keys[0], 1, 1, img_chn, num_classes),
        "casenet_fused": conv_p(keys[1], 1, 1, img_chn, num_classes),
        "stn": {
            "en11": conv_p(keys[2], 3, 3, in_chn, cn),
            "en12": conv_p(keys[3], 3, 3, cn, cn),
            "en21": conv_p(keys[4], 3, 3, cn, 2 * cn),
            "en22": conv_p(keys[5], 3, 3, 2 * cn, 2 * cn),
            "maxde": conv_p(keys[6], 4, 4, 2 * cn, 2 * cn),
            "de12": conv_p(keys[7], 3, 3, 2 * cn, cn),
            "de11": conv_p(keys[8], 3, 3, cn, 2),
        },
    }


def localization_forward(p, x_nhwc):
    h = conv2d_pallas(x_nhwc, *p["en11"], padding=1, bn_relu=True)
    h = conv2d_pallas(h, *p["en12"], padding=1, bn_relu=True)
    h = _maxpool2x2(h)                                     # MaxEn (indices unused)
    h = conv2d_pallas(h, *p["en21"], padding=1, bn_relu=True)
    h = conv2d_pallas(h, *p["en22"], padding=1, bn_relu=True)
    h = conv_transpose2d_4x4_s2_pallas(h, *p["maxde"])     # MaxDe + offset crop
    h = conv2d_pallas(h, *p["de12"], padding=1, bn_relu=True)
    h = conv2d_pallas(h, *p["de11"], padding=1)            # ConvDe11, no BN/ReLU
    return h  # (N, H, W, 2) f32


def stn_forward(p, x_nchw, score_fused_nchw, target=None, conf_pred=False):
    x_min = jnp.min(x_nchw)
    x_max = jnp.max(x_nchw)
    x_norm = (x_nchw - x_min) / (x_max - x_min)
    sigmoid_pred = jax.nn.sigmoid(score_fused_nchw)
    if conf_pred:
        sigmoid_pred = (sigmoid_pred > 0.1).astype(jnp.float32)
    parts = [x_norm, sigmoid_pred] + ([target] if target is not None else [])
    x_with_pred = jnp.concatenate(parts, axis=1)  # NCHW, C = 3 + num_classes (+nc)

    flow = localization_forward(p, jnp.transpose(x_with_pred, (0, 2, 3, 1)))  # (N,H,W,2)
    flow = jnp.transpose(flow, (0, 3, 1, 2))                                  # (N,2,H,W)
    flow_field = 10.0 * (jax.nn.sigmoid(flow) - 0.5) / 0.5

    # SpaticalTransformer: identity grid + flow, normalize to [-1,1], swap to (x,y)
    N, _, H, W = flow_field.shape
    gy = jax.lax.broadcasted_iota(jnp.float32, (H, W), 0)
    gx = jax.lax.broadcasted_iota(jnp.float32, (H, W), 1)
    new_y = gy[None] + flow_field[:, 0]
    new_x = gx[None] + flow_field[:, 1]
    ny = 2.0 * (new_y / (H - 1) - 0.5)
    nx = 2.0 * (new_x / (W - 1) - 0.5)
    locs = jnp.stack([nx, ny], axis=-1)              # (N,H,W,2), last dim (x, y)

    src = jnp.transpose(sigmoid_pred, (0, 2, 3, 1))  # NHWC
    y_nhwc = grid_sample_bilinear(src, locs)
    return jnp.transpose(y_nhwc, (0, 3, 1, 2)), flow_field


def casenet_stn_forward(params, x_nchw, target=None, conf_on=False, inference_mode=False):
    # CASENet stand-in (see TODO(synk) above): the two 1x1 convs are fused into
    # a single pallas_call (weights concatenated along Cout) and split after.
    x_nhwc = jnp.transpose(x_nchw, (0, 2, 3, 1))
    w5, b5 = params["casenet_feats5"]
    wf, bfb = params["casenet_fused"]
    nc = b5.shape[0]
    scores = conv2d_pallas(x_nhwc,
                           jnp.concatenate([w5, wf], axis=-1),
                           jnp.concatenate([b5, bfb], axis=0), padding=0)
    score_feats5 = jnp.transpose(scores[..., :nc], (0, 3, 1, 2))
    score_fused = jnp.transpose(scores[..., nc:], (0, 3, 1, 2))
    if inference_mode:
        return score_feats5, score_fused, None, None
    # detach_x=True: .detach() has no effect on a forward-only computation
    y_score_fused, flow_field = stn_forward(
        params["stn"], x_nchw, score_fused, target=target, conf_pred=conf_on)
    return score_feats5, score_fused, y_score_fused, flow_field


if __name__ == "__main__":
    # Self-check of the fixed ConvTranspose2d(4,4,s=2)+crop phase decomposition.
    kt, kw_, kb_ = jax.random.split(jax.random.PRNGKey(1), 3)
    xt = jax.random.normal(kt, (1, 8, 16, 8), jnp.float32)
    wt = jax.random.normal(kw_, (4, 4, 8, 8), jnp.float32) * 0.1
    bt = jax.random.normal(kb_, (8,), jnp.float32) * 0.1
    got = conv_transpose2d_4x4_s2_pallas(xt, wt, bt).astype(jnp.float32)
    ref = _ref_conv_transpose_crop(xt, wt, bt)
    assert got.shape == ref.shape
    assert float(jnp.max(jnp.abs(got - ref))) < 0.05, "conv-transpose phase mismatch"

    NUM_CLASSES = 20
    N, C_IMG, HGT, WID = 2, 3, 16, 16          # field_size = (16, 16)
    key = jax.random.PRNGKey(0)
    kp, kx = jax.random.split(key)
    params = init_params(kp, num_classes=NUM_CLASSES, in_chn=C_IMG + NUM_CLASSES)
    x = jax.random.normal(kx, (N, C_IMG, HGT, WID), jnp.float32)

    fwd = jax.jit(casenet_stn_forward)
    outs = jax.block_until_ready(fwd(params, x))
    score_feats5, score_fused, y_score_fused, flow_field = outs

    assert score_feats5.shape == (N, NUM_CLASSES, HGT, WID)
    assert score_fused.shape == (N, NUM_CLASSES, HGT, WID)
    assert y_score_fused.shape == (N, NUM_CLASSES, HGT, WID)
    assert flow_field.shape == (N, 2, HGT, WID)
    assert all(bool(jnp.all(jnp.isfinite(o))) for o in outs)
    print("KERNEL_OK")
</pallas_src>

<mosaic_0001>
module attributes {stable_mosaic.version = 11 : i64} {
  func.func @_conv_bias_kernel(%arg0: i32, %arg1: memref<128x128xbf16, #tpu.memory_space<vmem>>, %arg2: memref<128x128xbf16, #tpu.memory_space<vmem>>, %arg3: memref<1x128xf32, #tpu.memory_space<vmem>>, %arg4: memref<128x128xbf16, #tpu.memory_space<vmem>>) attributes {dimension_semantics = [#tpu.dimension_semantics<parallel>], iteration_bounds = array<i64: 1>, scalar_prefetch = 0 : i64, scratch_operands = 0 : i64, tpu.core_type = #tpu.core_type<tc>, window_params = [{transform_indices = @transform_0, window_bounds = array<i64: 128, 128>}, {pipeline_mode = #tpu.pipeline_mode<synchronous>, transform_indices = @transform_1, window_bounds = array<i64: 128, 128>}, {pipeline_mode = #tpu.pipeline_mode<synchronous>, transform_indices = @transform_2, window_bounds = array<i64: 1, 128>}, {transform_indices = @transform_3, window_bounds = array<i64: 128, 128>}]} {
    %c0 = arith.constant 0 : index
    %c0_0 = arith.constant 0 : index
    %0 = vector.load %arg1[%c0, %c0_0] : memref<128x128xbf16, #tpu.memory_space<vmem>>, vector<128x128xbf16>
    %c0_1 = arith.constant 0 : index
    %c0_2 = arith.constant 0 : index
    %1 = vector.load %arg2[%c0_1, %c0_2] : memref<128x128xbf16, #tpu.memory_space<vmem>>, vector<128x128xbf16>
    %cst = arith.constant dense<0.000000e+00> : vector<128x128xf32>
    %2 = tpu.matmul %0, %1, %cst {dimension_numbers = #tpu.dot_dimension_numbers<[1], [0], [0], [1], [0, 0, 1, 1], [], []>} : vector<128x128xbf16>, vector<128x128xbf16>, vector<128x128xf32> -> vector<128x128xf32>
    %c0_3 = arith.constant 0 : index
    %c0_4 = arith.constant 0 : index
    %3 = vector.load %arg3[%c0_3, %c0_4] : memref<1x128xf32, #tpu.memory_space<vmem>>, vector<1x128xf32>
    %4 = vector.broadcast %3 : vector<1x128xf32> to vector<128x128xf32>
    %5 = arith.addf %2, %4 : vector<128x128xf32>
    %6 = arith.truncf %5 : vector<128x128xf32> to vector<128x128xbf16>
    %c0_5 = arith.constant 0 : index
    %c0_6 = arith.constant 0 : index
    %7 = vector.load %arg4[%c0_5, %c0_6] : memref<128x128xbf16, #tpu.memory_space<vmem>>, vector<128x128xbf16>
    tpu.vector_store %arg4[%c0_5, %c0_6], %6 {strides = array<i32>} : memref<128x128xbf16, #tpu.memory_space<vmem>>, vector<128x128xbf16>,
    return
  }
  func.func @transform_0(%arg0: i32) -> (i32, i32) {
    %c0_i32 = arith.constant 0 : i32
    %c0_i32_0 = arith.constant 0 : i32
    return %arg0, %c0_i32 : i32, i32
  }
  func.func @transform_1(%arg0: i32) -> (i32, i32) {
    %c0_i32 = arith.constant 0 : i32
    %c0_i32_0 = arith.constant 0 : i32
    %c0_i32_1 = arith.constant 0 : i32
    return %c0_i32, %c0_i32_0 : i32, i32
  }
  func.func @transform_2(%arg0: i32) -> (i32, i32) {
    %c0_i32 = arith.constant 0 : i32
    %c0_i32_0 = arith.constant 0 : i32
    %c0_i32_1 = arith.constant 0 : i32
    return %c0_i32, %c0_i32_0 : i32, i32
  }
  func.func @transform_3(%arg0: i32) -> (i32, i32) {
    %c0_i32 = arith.constant 0 : i32
    %c0_i32_0 = arith.constant 0 : i32
    return %arg0, %c0_i32 : i32, i32
  }
}

</mosaic_0001>

<llo_original>
// kernel: tpu_custom_call.1
$region0: #{tpu_custom_call.1}
  #allocation0 [shape = 'u32[]', space=smem, size = 0x4, offset = 0x4, fixed_abs, tag = 'smem constant byte address 0x4 - core index']
  #allocation1 [shape = 'u32[144,128]{1,0:T(1,128)}', space=vmem, size = 0x12000, scoped, tag = 'internal scratch']
  %s0 = inlined_call_operand.hbm [shape: bf16[128,128], index: 0, kind: input, shape index: {}]
  %s1 = inlined_call_operand.hbm [shape: bf16[128,128], index: 1, kind: input, shape index: {}]
  %s2 = inlined_call_operand.vmem [shape: f32[1,128], index: 2, kind: input, shape index: {}]
  %s3 = inlined_call_operand.hbm [shape: bf16[128,128], index: 3, kind: output, shape index: {}]
  %s4 = sld [smem:[#allocation0]]
  $region30: #{tpu_custom_call.1} parent=0
    _
  %s6 = ssub.s32 1, %s4
  %s7 = scalar_select 0, %s6, %s4
  $region1: #{tpu_custom_call.1} parent=0
    #allocation2 [shape = 'u8[32768]{0}', space=vmem, size = 0x8000, scoped, tag = 'input window, operand 0, single buffered']
    #allocation3 [shape = 's32[1]{0}', space=sflag, size = 0x4, scoped, tag = 'scoped memory for tpu_custom_call.1']
    #allocation4 [shape = 's32[1]{0}', space=sflag, size = 0x4, scoped, tag = 'scoped memory for tpu_custom_call.1']
    #allocation5 [shape = 'u8[32768]{0}', space=vmem, size = 0x8000, scoped, tag = 'input window, operand 1, single buffered']
    #allocation6 [shape = 's32[1]{0}', space=sflag, size = 0x4, scoped, tag = 'scoped memory for tpu_custom_call.1']
    #allocation7 [shape = 'u8[32768]{0}', space=vmem, size = 0x8000, scoped, tag = 'output window, operand 0, single buffered']
    %8 = vsyncpa [#allocation3], 0
    %9 = vsyncpa [#allocation6], 0
    %10 = vsyncpa [#allocation4], 0
    // Predicated region
    $region2: #{tpu_custom_call.1} parent=1 // pred_check
      _
    $region3: #{tpu_custom_call.1} parent=1 // pred_check_branch
      %12 = sbr.rel (0) target = $region5
    $region4: #{tpu_custom_call.1} parent=1 // pred_region
      %s14 = ssub.s32 1024, 1024
      %15 = vsyncadd [#allocation3], %s14
      %s16 = sshll.u32 [#allocation2], 4
      %s17 = int_to_ptr.vmem [resolvable:$true] %s16
      %22 = dma.hbm_to_vmem [thread:$0]  %s0, 1024, %s17, [#allocation3], 64, 64, 4
    $region5: #{tpu_custom_call.1} parent=1 // pred_fallthru
      _
    // Predicated region
    $region6: #{tpu_custom_call.1} parent=1 // pred_check
      _
    $region7: #{tpu_custom_call.1} parent=1 // pred_check_branch
      %24 = sbr.rel (0) target = $region9
    $region8: #{tpu_custom_call.1} parent=1 // pred_region
      %s26 = ssub.s32 1024, 1024
      %27 = vsyncadd [#allocation6], %s26
      %s28 = sshll.u32 [#allocation5], 4
      %s29 = int_to_ptr.vmem [resolvable:$true] %s28
      %34 = dma.hbm_to_vmem [thread:$0]  %s1, 1024, %s29, [#allocation6], 64, 64, 4
    $region9: #{tpu_custom_call.1} parent=1 // pred_fallthru
      _
    // Predicated region
    $region10: #{tpu_custom_call.1} parent=1 // pred_check
      _
    $region11: #{tpu_custom_call.1} parent=1 // pred_check_branch
      %36 = sbr.rel (0) target = $region13
    $region12: #{tpu_custom_call.1} parent=1 // pred_region
      _
    $region13: #{tpu_custom_call.1} parent=1 // pred_fallthru
      _
    // Predicated region
    $region14: #{tpu_custom_call.1} parent=1 // pred_check
      _
    $region15: #{tpu_custom_call.1} parent=1 // pred_check_branch
      %38 = sbr.rel (0) target = $region17
    $region16: #{tpu_custom_call.1} parent=1 // pred_region
      %39 = dma.done [#allocation3], 1024
    $region17: #{tpu_custom_call.1} parent=1 // pred_fallthru
      _
    // Predicated region
    $region18: #{tpu_custom_call.1} parent=1 // pred_check
      _
    $region19: #{tpu_custom_call.1} parent=1 // pred_check_branch
      %41 = sbr.rel (0) target = $region21
    $region20: #{tpu_custom_call.1} parent=1 // pred_region
      %42 = dma.done [#allocation6], 1024
    $region21: #{tpu_custom_call.1} parent=1 // pred_fallthru
      _
    %v44 = vld [vmem:[#allocation2] sm:$0xf]
    %v45 = vld [vmem:[#allocation2 + $0x4] sm:$0xf]
    %v46 = vld [vmem:[#allocation2 + $0x8] sm:$0xf]
    %v47 = vld [vmem:[#allocation2 + $0xc] sm:$0xf]
    %v48 = vld [vmem:[#allocation2 + $0x10] sm:$0xf]
    %v49 = vld [vmem:[#allocation2 + $0x14] sm:$0xf]
    %v50 = vld [vmem:[#allocation2 + $0x18] sm:$0xf]
    %v51 = vld [vmem:[#allocation2 + $0x1c] sm:$0xf]
    %v52 = vld [vmem:[#allocation2 + $0x20] sm:$0xf]
    %v53 = vld [vmem:[#allocation2 + $0x24] sm:$0xf]
    %v54 = vld [vmem:[#allocation2 + $0x28] sm:$0xf]
    %v55 = vld [vmem:[#allocation2 + $0x2c] sm:$0xf]
    %v56 = vld [vmem:[#allocation2 + $0x30] sm:$0xf]
    %v57 = vld [vmem:[#allocation2 + $0x34] sm:$0xf]
    %v58 = vld [vmem:[#allocation2 + $0x38] sm:$0xf]
    %v59 = vld [vmem:[#allocation2 + $0x3c] sm:$0xf]
    %v60 = vld [vmem:[#allocation5] sm:$0xf]
    %v61 = vld [vmem:[#allocation5 + $0x4] sm:$0xf]
    %v62 = vld [vmem:[#allocation5 + $0x8] sm:$0xf]
    %v63 = vld [vmem:[#allocation5 + $0xc] sm:$0xf]
    %v64 = vld [vmem:[#allocation5 + $0x10] sm:$0xf]
    %v65 = vld [vmem:[#allocation5 + $0x14] sm:$0xf]
    %v66 = vld [vmem:[#allocation5 + $0x18] sm:$0xf]
    %v67 = vld [vmem:[#allocation5 + $0x1c] sm:$0xf]
    %v68 = vld [vmem:[#allocation5 + $0x20] sm:$0xf]
    %v69 = vld [vmem:[#allocation5 + $0x24] sm:$0xf]
    %v70 = vld [vmem:[#allocation5 + $0x28] sm:$0xf]
    %v71 = vld [vmem:[#allocation5 + $0x2c] sm:$0xf]
    %v72 = vld [vmem:[#allocation5 + $0x30] sm:$0xf]
    %v73 = vld [vmem:[#allocation5 + $0x34] sm:$0xf]
    %v74 = vld [vmem:[#allocation5 + $0x38] sm:$0xf]
    %v75 = vld [vmem:[#allocation5 + $0x3c] sm:$0xf]
    %v76 = vld [vmem:[%s2] sm:$0x1]
    %v78 = vlaneseq
    %v79 = vshrl.u32 %v78, 7
    %v80 = vsub.s32 0, %v79
    %v81 = vrot.slane %v76, %v80
    %v99 = vunpack.c.l.b16 %v44
    %v100 = vunpack.c.l.b16 %v45
    %v101 = vunpack.c.l.b16 %v46
    %v102 = vunpack.c.l.b16 %v47
    %v103 = vunpack.c.l.b16 %v48
    %v104 = vunpack.c.l.b16 %v49
    %v105 = vunpack.c.l.b16 %v50
    %v106 = vunpack.c.l.b16 %v51
    %v107 = vunpack.c.l.b16 %v52
    %v108 = vunpack.c.l.b16 %v53
    %v109 = vunpack.c.l.b16 %v54
    %v110 = vunpack.c.l.b16 %v55
    %v111 = vunpack.c.l.b16 %v56
    %v112 = vunpack.c.l.b16 %v57
    %v113 = vunpack.c.l.b16 %v58
    %v114 = vunpack.c.l.b16 %v59
    %v115 = vpack.c.b16 %v100, %v99
    %v116 = vpack.c.b16 %v102, %v101
    %v117 = vpack.c.b16 %v104, %v103
    %v118 = vpack.c.b16 %v106, %v105
    %v119 = vpack.c.b16 %v108, %v107
    %v120 = vpack.c.b16 %v110, %v109
    %v121 = vpack.c.b16 %v112, %v111
    %v122 = vpack.c.b16 %v114, %v113
    %v147 = vunpack.c.l.b16 %v60
    %v148 = vunpack.c.l.b16 %v61
    %v149 = vunpack.c.l.b16 %v62
    %v150 = vunpack.c.l.b16 %v63
    %v151 = vunpack.c.l.b16 %v64
    %v152 = vunpack.c.l.b16 %v65
    %v153 = vunpack.c.l.b16 %v66
    %v154 = vunpack.c.l.b16 %v67
    %v155 = vunpack.c.l.b16 %v68
    %v156 = vunpack.c.l.b16 %v69
    %v157 = vunpack.c.l.b16 %v70
    %v158 = vunpack.c.l.b16 %v71
    %v159 = vunpack.c.l.b16 %v72
    %v160 = vunpack.c.l.b16 %v73
    %v161 = vunpack.c.l.b16 %v74
    %v162 = vunpack.c.l.b16 %v75
    %v163 = vpack.c.b16 %v148, %v147
    %v164 = vpack.c.b16 %v150, %v149
    %v165 = vpack.c.b16 %v152, %v151
    %v166 = vpack.c.b16 %v154, %v153
    %v167 = vpack.c.b16 %v156, %v155
    %v168 = vpack.c.b16 %v158, %v157
    %v169 = vpack.c.b16 %v160, %v159
    %v170 = vpack.c.b16 %v162, %v161
    %179 = vmatprep.subr.bf16.mxu0 0
    %180 = vmatpush1.bf16.msra.mxu0 %v170
    %181 = vmatprep.subr.bf16.mxu0 0
    %182 = vmatpush1.bf16.msra.mxu0 %v169
    %183 = vmatprep.subr.bf16.mxu0 0
    %184 = vmatpush1.bf16.msra.mxu0 %v168
    %185 = vmatprep.subr.bf16.mxu0 0
    %186 = vmatpush1.bf16.msra.mxu0 %v167
    %187 = vmatprep.subr.bf16.mxu0 0
    %188 = vmatpush1.bf16.msra.mxu0 %v166
    %189 = vmatprep.subr.bf16.mxu0 0
    %190 = vmatpush1.bf16.msra.mxu0 %v165
    %191 = vmatprep.subr.bf16.mxu0 0
    %192 = vmatpush1.bf16.msra.mxu0 %v164
    %193 = vmatprep.subr.bf16.mxu0 0
    %194 = vmatpush1.bf16.msra.mxu0 %v163
    %195 = vmatprep.subr.bf16.mxu0 0
    %196 = vmatpush2.bf16.msra.mxu0 0
    %197 = vmatprep.subr.bf16.mxu0 0
    %198 = vmatpush2.bf16.msra.mxu0 0
    %199 = vmatprep.subr.bf16.mxu0 0
    %200 = vmatpush2.bf16.msra.mxu0 0
    %201 = vmatprep.subr.bf16.mxu0 0
    %202 = vmatpush2.bf16.msra.mxu0 0
    %203 = vmatprep.subr.bf16.mxu0 0
    %204 = vmatpush2.bf16.msra.mxu0 0
    %205 = vmatprep.subr.bf16.mxu0 0
    %206 = vmatpush2.bf16.msra.mxu0 0
    %207 = vmatprep.subr.bf16.mxu0 0
    %208 = vmatpush2.bf16.msra.mxu0 0
    %209 = vmatprep.subr.bf16.mxu0 0
    %210 = vmatpush2.bf16.msra.mxu0 0
    %211 = vmatprep.mubr.bf16.mxu0 0
    %212 = vmatmul.mubr.bf16.gmra.mxu0 %v115
    %v213 = vpop.f32.mrf.mxu0
    %v214 = vadd.f32 %v81, %v213
    %v215 = vpop.f32.mrf.mxu0
    %v216 = vpop.f32.mrf.mxu0
    %v217 = vadd.f32 %v81, %v216
    %v218 = vpop.f32.mrf.mxu0
    %219 = vmatprep.mubr.bf16.mxu0 0
    %220 = vmatmul.mubr.bf16.gmra.mxu0 %v116
    %v221 = vpop.f32.mrf.mxu0
    %v222 = vadd.f32 %v81, %v221
    %v223 = vpop.f32.mrf.mxu0
    %v224 = vpop.f32.mrf.mxu0
    %v225 = vadd.f32 %v81, %v224
    %v226 = vpop.f32.mrf.mxu0
    %227 = vmatprep.mubr.bf16.mxu0 0
    %228 = vmatmul.mubr.bf16.gmra.mxu0 %v117
    %v229 = vpop.f32.mrf.mxu0
    %v230 = vadd.f32 %v81, %v229
    %v231 = vpop.f32.mrf.mxu0
    %v232 = vpop.f32.mrf.mxu0
    %v233 = vadd.f32 %v81, %v232
    %v234 = vpop.f32.mrf.mxu0
    %235 = vmatprep.mubr.bf16.mxu0 0
    %236 = vmatmul.mubr.bf16.gmra.mxu0 %v118
    %v237 = vpop.f32.mrf.mxu0
    %v238 = vadd.f32 %v81, %v237
    %v239 = vpop.f32.mrf.mxu0
    %v240 = vpop.f32.mrf.mxu0
    %v241 = vadd.f32 %v81, %v240
    %v242 = vpop.f32.mrf.mxu0
    %243 = vmatprep.mubr.bf16.mxu0 0
    %244 = vmatmul.mubr.bf16.gmra.mxu0 %v119
    %v245 = vpop.f32.mrf.mxu0
    %v246 = vadd.f32 %v81, %v245
    %v247 = vpop.f32.mrf.mxu0
    %v248 = vpop.f32.mrf.mxu0
    %v249 = vadd.f32 %v81, %v248
    %v250 = vpop.f32.mrf.mxu0
    %251 = vmatprep.mubr.bf16.mxu0 0
    %252 = vmatmul.mubr.bf16.gmra.mxu0 %v120
    %v253 = vpop.f32.mrf.mxu0
    %v254 = vadd.f32 %v81, %v253
    %v255 = vpop.f32.mrf.mxu0
    %v256 = vpop.f32.mrf.mxu0
    %v257 = vadd.f32 %v81, %v256
    %v258 = vpop.f32.mrf.mxu0
    %259 = vmatprep.mubr.bf16.mxu0 0
    %260 = vmatmul.mubr.bf16.gmra.mxu0 %v121
    %v261 = vpop.f32.mrf.mxu0
    %v262 = vadd.f32 %v81, %v261
    %v263 = vpop.f32.mrf.mxu0
    %v264 = vpop.f32.mrf.mxu0
    %v265 = vadd.f32 %v81, %v264
    %v266 = vpop.f32.mrf.mxu0
    %267 = vmatprep.mubr.bf16.mxu0 0
    %268 = vmatmul.mubr.bf16.gmra.mxu0 %v122
    %v269 = vpop.f32.mrf.mxu0
    %v270 = vadd.f32 %v81, %v269
    %v271 = vpop.f32.mrf.mxu0
    %v272 = vpop.f32.mrf.mxu0
    %v273 = vadd.f32 %v81, %v272
    %v274 = vpop.f32.mrf.mxu0
    %275 = vdwg.mxu0
    %v276 = vpack.c.bf16 %v217, %v214
    %v277 = vpack.c.bf16 %v225, %v222
    %v278 = vpack.c.bf16 %v233, %v230
    %v279 = vpack.c.bf16 %v241, %v238
    %v280 = vpack.c.bf16 %v249, %v246
    %v281 = vpack.c.bf16 %v257, %v254
    %v282 = vpack.c.bf16 %v265, %v262
    %v283 = vpack.c.bf16 %v273, %v270
    %v292 = vunpack.c.l.b16 %v276
    %v293 = vunpack.c.h.b16 %v276
    %v294 = vunpack.c.l.b16 %v277
    %v295 = vunpack.c.h.b16 %v277
    %v296 = vunpack.c.l.b16 %v278
    %v297 = vunpack.c.h.b16 %v278
    %v298 = vunpack.c.l.b16 %v279
    %v299 = vunpack.c.h.b16 %v279
    %v300 = vunpack.c.l.b16 %v280
    %v301 = vunpack.c.h.b16 %v280
    %v302 = vunpack.c.l.b16 %v281
    %v303 = vunpack.c.h.b16 %v281
    %v304 = vunpack.c.l.b16 %v282
    %v305 = vunpack.c.h.b16 %v282
    %v306 = vunpack.c.l.b16 %v283
    %v307 = vunpack.c.h.b16 %v283
    %v308 = vpack.c.b16 %v292, %v292
    %v309 = vpack.c.b16 %v293, %v293
    %v310 = vpack.c.b16 %v294, %v294
    %v311 = vpack.c.b16 %v295, %v295
    %v312 = vpack.c.b16 %v296, %v296
    %v313 = vpack.c.b16 %v297, %v297
    %v314 = vpack.c.b16 %v298, %v298
    %v315 = vpack.c.b16 %v299, %v299
    %v316 = vpack.c.b16 %v300, %v300
    %v317 = vpack.c.b16 %v301, %v301
    %v318 = vpack.c.b16 %v302, %v302
    %v319 = vpack.c.b16 %v303, %v303
    %v320 = vpack.c.b16 %v304, %v304
    %v321 = vpack.c.b16 %v305, %v305
    %v322 = vpack.c.b16 %v306, %v306
    %v323 = vpack.c.b16 %v307, %v307
    %340 = vst [vmem:[#allocation7] sm:$0xf] %v308
    %341 = vst [vmem:[#allocation7 + $0x4] sm:$0xf] %v309
    %342 = vst [vmem:[#allocation7 + $0x8] sm:$0xf] %v310
    %343 = vst [vmem:[#allocation7 + $0xc] sm:$0xf] %v311
    %344 = vst [vmem:[#allocation7 + $0x10] sm:$0xf] %v312
    %345 = vst [vmem:[#allocation7 + $0x14] sm:$0xf] %v313
    %346 = vst [vmem:[#allocation7 + $0x18] sm:$0xf] %v314
    %347 = vst [vmem:[#allocation7 + $0x1c] sm:$0xf] %v315
    %348 = vst [vmem:[#allocation7 + $0x20] sm:$0xf] %v316
    %349 = vst [vmem:[#allocation7 + $0x24] sm:$0xf] %v317
    %350 = vst [vmem:[#allocation7 + $0x28] sm:$0xf] %v318
    %351 = vst [vmem:[#allocation7 + $0x2c] sm:$0xf] %v319
    %352 = vst [vmem:[#allocation7 + $0x30] sm:$0xf] %v320
    %353 = vst [vmem:[#allocation7 + $0x34] sm:$0xf] %v321
    %354 = vst [vmem:[#allocation7 + $0x38] sm:$0xf] %v322
    %355 = vst [vmem:[#allocation7 + $0x3c] sm:$0xf] %v323
    // Predicated region
    $region22: #{tpu_custom_call.1} parent=1 // pred_check
      _
    $region23: #{tpu_custom_call.1} parent=1 // pred_check_branch
      %357 = sbr.rel (0) target = $region25
    $region24: #{tpu_custom_call.1} parent=1 // pred_region
      %s359 = ssub.s32 1024, 1024
      %360 = vsyncadd [#allocation4], %s359
      %s361 = sshll.u32 [#allocation7], 4
      %s362 = int_to_ptr.vmem [resolvable:$true] %s361
      %367 = dma.vmem_to_hbm [thread:$0]  %s362, 1024, %s3, [#allocation4], 64, 64, 4
    $region25: #{tpu_custom_call.1} parent=1 // pred_fallthru
      _
    // Predicated region
    $region26: #{tpu_custom_call.1} parent=1 // pred_check
      _
    $region27: #{tpu_custom_call.1} parent=1 // pred_check_branch
      %369 = sbr.rel (0) target = $region29
    $region28: #{tpu_custom_call.1} parent=1 // pred_region
      %370 = dma.done [#allocation4], 1024
    $region29: #{tpu_custom_call.1} parent=1 // pred_fallthru
      _
    %371 = vsyncpa [#allocation3], 1
    %372 = vsyncpa [#allocation6], 1
    %373 = vsyncpa [#allocation4], 1

</llo_original>
